<compile_context>
chip_gen: v6e
topology: v6e:2x2x1
jax: 0.10.0
libtpu: 0.0.40
codegen_flags: <defaults>
</compile_context>

<pallas_src>
import jax
import jax.numpy as jnp
from jax.experimental import pallas as pl
from jax.experimental.pallas import tpu as pltpu


def _round_up(x, m):
    return ((x + m - 1) // m) * m


def _vmem_limit_bytes():
    """Scoped-VMEM limit: raise v5e's 16 MiB / v6e's 32 MiB defaults, stay well under
    v7x's 64 MiB physical VMEM (v5e/v6e have 128 MiB physical)."""
    try:
        cap = int(pltpu.get_tpu_info().vmem_capacity_bytes)
    except Exception:
        cap = 64 * 1024 * 1024  # conservative (v7x-sized) fallback
    return max(32 * 1024 * 1024, min(cap * 3 // 4, 64 * 1024 * 1024))


def _pick_batch_tile(batch, bytes_per_row, budget, max_batch_tile=None):
    """Largest multiple-of-8 batch tile whose per-tile working set fits `budget`.

    bt is a multiple of 8 so the decp/mask/out blocks are sublane-dense (unmasked vst
    stores, (8,*)-aligned block dims).  Among fitting sizes, prefer one that yields an
    even number of grid steps so dimension_semantics=("parallel",) splits evenly across
    v7x's two TensorCores (harmless on single-core v5e/v6e).
    """
    cap = max(8, (budget // max(bytes_per_row, 1)) // 8 * 8)
    cap = min(cap, _round_up(batch, 8))
    if max_batch_tile is not None:
        cap = min(cap, max(8, max_batch_tile // 8 * 8))
    bt = cap
    steps = pl.cdiv(batch, bt)
    if steps > 1 and steps % 2 == 1:
        even = [t for t in range(8, cap + 1, 8) if pl.cdiv(batch, t) % 2 == 0]
        if even and max(even) * 2 >= bt:  # don't trade more than 2x tile size for parity
            bt = max(even)
    return bt


def attention_kernel(enc_ref, decp_ref, wenc_ref, v_ref, mask_ref, out_ref):
    # enc_ref  : [Bt, S_p, 2E_p] compute dtype (bf16/f32), zero-padded encoder outputs
    # decp_ref : [Bt, D]  f32    precomputed dec_hid @ W_dec^T + b
    # wenc_ref : [2E_p, D]       encoder slice of the Linear weight (transposed)
    # v_ref    : [1, D]   f32    attention vector v
    # mask_ref : [Bt, S_p] f32   0 = drop (padded rows/cols are 0)
    # out_ref  : [Bt, S_p] f32   softmax over the src_len axis
    bt, s_p, two_e = enc_ref.shape
    d = wenc_ref.shape[1]

    # One MXU matmul with M = Bt * S_p rows; bf16 inputs, f32 accumulation.
    enc2d = enc_ref[...].reshape(bt * s_p, two_e)
    energy = jnp.dot(enc2d, wenc_ref[...],
                     preferred_element_type=jnp.float32)              # [Bt*S_p, D]

    # energy = tanh(enc @ Wenc^T + (dec @ Wdec^T + b)); dec part precomputed outside.
    # Epilogue kept in f32 (v5e has no bf16 VPU/EUP; bf16 here is a v6e/v7x-only knob).
    energy = energy.reshape(bt, s_p, d) + decp_ref[...][:, None, :]    # [Bt, S_p, D]
    energy = jnp.tanh(energy)

    # scores = v . energy  (VPU multiply + XLU lane reduce; see header re: MXU option).
    scores = jnp.sum(energy * v_ref[...][None, :, :], axis=-1)         # [Bt, S_p]

    # masked_fill(mask == 0, -1e10); padded rows/columns have mask == 0 as well.
    scores = jnp.where(mask_ref[...] == 0.0, jnp.float32(-1e10), scores)

    # Softmax over src_len. exp(-1e10 - m) underflows to exactly 0 for padded columns.
    m = jnp.max(scores, axis=-1, keepdims=True)
    e = jnp.exp(scores - m)
    denom = jnp.sum(e, axis=-1, keepdims=True)                         # [Bt, 1], >= 1
    inv = pl.reciprocal(denom, approx=True)        # EUP approximate reciprocal
    inv = inv * (2.0 - denom * inv)                # one Newton step: f32 accuracy
    out_ref[...] = e * inv


def attention_forward(enc_outs, dec_hid, mask, W, b, v, *,
                      compute_dtype=jnp.bfloat16, max_batch_tile=None):
    """
    enc_outs : [src_len, batch, 2*enc_hid]   (PyTorch layout)
    dec_hid  : [batch, dec_hid]
    mask     : [batch, src_len]
    W        : [dec_hid, 2*enc_hid + dec_hid]  (nn.Linear weight, out x in)
    b        : [dec_hid]
    v        : [dec_hid]
    returns  : [batch, src_len]  softmax attention weights
    """
    src_len, batch, two_enc = enc_outs.shape
    dec_dim = dec_hid.shape[1]
    ebytes = jnp.dtype(compute_dtype).itemsize

    # ---- Padded sizes -------------------------------------------------------------
    # S: multiple of 8 only (sublane-aligned matmul rows). The [B,S] mask/out tiles are
    # tiny next to the [B,S,2E] enc stream, so 128-padding S would only waste enc DMA.
    s_p = _round_up(src_len, 8)
    # 2E: pad to a multiple of 128 only if it inflates the dominant HBM stream <= 12.5%.
    two_enc_p = _round_up(two_enc, 128)
    if two_enc_p * 8 > two_enc * 9:
        two_enc_p = two_enc  # full-dim (non-128) last block dim is legal & contiguous

    # ---- VMEM-aware batch tile ------------------------------------------------------
    vmem_limit = _vmem_limit_bytes()
    tile_budget = vmem_limit // 2            # headroom for compiler scratch / slop
    fixed = 2 * (two_enc_p * dec_dim * ebytes + dec_dim * 4)   # weight + v buffers
    per_row = (2 * s_p * two_enc_p * ebytes  # enc double buffer
               + 2 * dec_dim * 4             # decp double buffer
               + 4 * s_p * 4                 # mask + out double buffers
               + 3 * s_p * dec_dim * 4)      # in-kernel f32 energy temporaries (est.)
    bt = _pick_batch_tile(batch, per_row, max(tile_budget - fixed, per_row * 8),
                          max_batch_tile)
    batch_pad = _round_up(batch, bt)
    grid = batch_pad // bt

    # ---- Parameters ----------------------------------------------------------------
    # Split Linear weight to match the concat order cat([dec_hid, enc_outs], dim=2).
    w_dec = W[:, :dec_dim]                                             # [D, D]
    w_enc_t = jnp.transpose(W[:, dec_dim:]).astype(compute_dtype)      # [2E, D]
    if two_enc_p != two_enc:
        w_enc_t = jnp.pad(w_enc_t, ((0, two_enc_p - two_enc), (0, 0)))
    v2 = v.reshape(1, dec_dim).astype(jnp.float32)

    # Hoisted decoder projection: one batched matmul instead of an M=1 matmul per step.
    dec_proj = (dec_hid @ w_dec.T + b).astype(jnp.float32)             # [B, D]
    if batch_pad != batch:
        dec_proj = jnp.pad(dec_proj, ((0, batch_pad - batch), (0, 0)))

    # Batch-major + zero-pad + bf16 cast in ONE fused wrapper-side XLA copy (the cast
    # also halves this copy's write traffic).  See TODO(synk) in the header for the
    # native-layout (no-transpose) path at deployment batch sizes.
    enc_b = jnp.transpose(enc_outs, (1, 0, 2)).astype(compute_dtype)   # [B, S, 2E]
    pads = ((0, batch_pad - batch), (0, s_p - src_len), (0, two_enc_p - two_enc))
    if any(p for _, p in pads):
        enc_b = jnp.pad(enc_b, pads)
    mask_f = mask.astype(jnp.float32)                                  # [B, S]
    if batch_pad != batch or s_p != src_len:
        mask_f = jnp.pad(mask_f, ((0, batch_pad - batch), (0, s_p - src_len)))

    # ---- Cost hint so XLA schedules the wrapper-side ops around the kernel ----------
    cost = pl.CostEstimate(
        flops=2 * batch_pad * s_p * two_enc_p * dec_dim + 6 * batch_pad * s_p * dec_dim,
        transcendentals=batch_pad * s_p * (dec_dim + 1),               # tanh + exp
        bytes_accessed=(enc_b.size * ebytes + w_enc_t.size * ebytes
                        + dec_proj.size * 4 + v2.size * 4
                        + mask_f.size * 4 + batch_pad * s_p * 4),
    )

    def _call(single_buffer_weights):
        # Grid-invariant operands (constant index_map) don't need double buffering.
        w_kwargs = ({"pipeline_mode": pl.Buffered(1)} if single_buffer_weights else {})
        grid_spec = pltpu.PrefetchScalarGridSpec(
            num_scalar_prefetch=0,
            grid=(grid,),
            in_specs=[
                pl.BlockSpec((bt, s_p, two_enc_p), lambda i: (i, 0, 0)),
                pl.BlockSpec((bt, dec_dim), lambda i: (i, 0)),
                pl.BlockSpec((two_enc_p, dec_dim), lambda i: (0, 0), **w_kwargs),
                pl.BlockSpec((1, dec_dim), lambda i: (0, 0), **w_kwargs),
                pl.BlockSpec((bt, s_p), lambda i: (i, 0)),
            ],
            out_specs=pl.BlockSpec((bt, s_p), lambda i: (i, 0)),
        )
        return pl.pallas_call(
            attention_kernel,
            out_shape=jax.ShapeDtypeStruct((batch_pad, s_p), jnp.float32),
            grid_spec=grid_spec,
            compiler_params=pltpu.CompilerParams(
                dimension_semantics=("parallel",),
                vmem_limit_bytes=int(vmem_limit)),
            cost_estimate=cost,
        )(enc_b, dec_proj, w_enc_t, v2, mask_f)

    try:
        out = _call(True)
    except Exception:
        # This jax build rejected pl.Buffered(1); the weight buffers are small, so
        # falling back to the default (double-buffered) pipeline mode is acceptable.
        out = _call(False)

    return out[:batch, :src_len]


def attention_reference(enc_outs, dec_hid, mask, W, b, v):
    """Pure-JAX reference mirroring the PyTorch forward exactly (f32)."""
    src_len, batch, _ = enc_outs.shape
    dec_rep = jnp.repeat(dec_hid[:, None, :], src_len, axis=1)     # [B, S, D]
    enc_b = jnp.transpose(enc_outs, (1, 0, 2))                     # [B, S, 2E]
    energy_in = jnp.concatenate([dec_rep, enc_b], axis=2)          # [B, S, 2E+D]
    energy = jnp.tanh(energy_in @ W.T + b)                         # [B, S, D]
    attn = jnp.einsum("d,bsd->bs", v, energy)                      # [B, S]
    attn = jnp.where(mask == 0, -1e10, attn)
    return jax.nn.softmax(attn, axis=1)


def _run_case(key, enc_hid_dim, dec_hid_dim, src_len, batch, *,
              compute_dtype=jnp.bfloat16, max_batch_tile=None):
    in_dim = enc_hid_dim * 2 + dec_hid_dim
    k1, k2, k3, k4, k5, k6 = jax.random.split(key, 6)

    # Deterministic parameter init (shapes from nn.Linear / nn.Parameter in __init__)
    bound = 1.0 / jnp.sqrt(jnp.float32(in_dim))
    W = jax.random.uniform(k1, (dec_hid_dim, in_dim), jnp.float32, -bound, bound)
    b = jax.random.uniform(k2, (dec_hid_dim,), jnp.float32, -bound, bound)
    v = jax.random.uniform(k3, (dec_hid_dim,), jnp.float32, 0.0, 1.0)   # torch.rand

    enc_outs = jax.random.normal(k4, (src_len, batch, 2 * enc_hid_dim), jnp.float32)
    dec_hid = jax.random.normal(k5, (batch, dec_hid_dim), jnp.float32)
    mask = (jax.random.uniform(k6, (batch, src_len)) > 0.3).astype(jnp.int32)
    mask = mask.at[:, 0].set(1)   # at least one valid position per row

    out = attention_forward(enc_outs, dec_hid, mask, W, b, v,
                            compute_dtype=compute_dtype, max_batch_tile=max_batch_tile)
    out = jax.block_until_ready(out)

    ref = attention_reference(enc_outs, dec_hid, mask, W, b, v)
    # f32 path is numerically identical modulo accumulation order; bf16 path carries
    # the expected bf16 rounding of the energy stream.
    tol = 2e-4 if jnp.dtype(compute_dtype) == jnp.dtype(jnp.float32) else 2e-2
    assert out.shape == (batch, src_len)
    assert jnp.allclose(out, ref, atol=tol, rtol=tol), (out, ref)
    assert jnp.allclose(out.sum(axis=1), 1.0, atol=1e-3)


if __name__ == "__main__":
    key = jax.random.PRNGKey(0)
    k_a, k_b, k_c = jax.random.split(key, 3)
    # f32 compute path: verifies kernel semantics exactly against the reference.
    _run_case(k_a, enc_hid_dim=16, dec_hid_dim=32, src_len=8, batch=2,
              compute_dtype=jnp.float32)
    # Default bf16 path; exercises batch padding (4 -> 8) and S padding (12 -> 16).
    _run_case(k_b, enc_hid_dim=8, dec_hid_dim=16, src_len=12, batch=4)
    # bf16 + multi-step grid: batch 12 -> tiles of 8 -> even grid of 2, padded tail rows.
    _run_case(k_c, enc_hid_dim=16, dec_hid_dim=32, src_len=24, batch=12,
              max_batch_tile=8)
    print("KERNEL_OK")
</pallas_src>

<mosaic_0001>
module attributes {stable_mosaic.version = 11 : i64} {
  func.func @attention_kernel(%arg0: i32, %arg1: memref<8x8x32xf32, #tpu.memory_space<vmem>>, %arg2: memref<8x32xf32, #tpu.memory_space<vmem>>, %arg3: memref<32x32xf32, #tpu.memory_space<vmem>>, %arg4: memref<1x32xf32, #tpu.memory_space<vmem>>, %arg5: memref<8x8xf32, #tpu.memory_space<vmem>>, %arg6: memref<8x8xf32, #tpu.memory_space<vmem>>) attributes {dimension_semantics = [#tpu.dimension_semantics<parallel>], iteration_bounds = array<i64: 1>, scalar_prefetch = 0 : i64, scratch_operands = 0 : i64, tpu.core_type = #tpu.core_type<tc>, window_params = [{transform_indices = @transform_0, window_bounds = array<i64: 8, 8, 32>}, {transform_indices = @transform_1, window_bounds = array<i64: 8, 32>}, {pipeline_mode = #tpu.pipeline_mode<synchronous>, transform_indices = @transform_2, window_bounds = array<i64: 32, 32>}, {pipeline_mode = #tpu.pipeline_mode<synchronous>, transform_indices = @transform_3, window_bounds = array<i64: 1, 32>}, {transform_indices = @transform_4, window_bounds = array<i64: 8, 8>}, {transform_indices = @transform_5, window_bounds = array<i64: 8, 8>}]} {
    %c0 = arith.constant 0 : index
    %c0_0 = arith.constant 0 : index
    %c0_1 = arith.constant 0 : index
    %0 = vector.load %arg1[%c0, %c0_0, %c0_1] : memref<8x8x32xf32, #tpu.memory_space<vmem>>, vector<8x8x32xf32>
    %1 = vector.shape_cast %0 : vector<8x8x32xf32> to vector<64x32xf32>
    %c0_2 = arith.constant 0 : index
    %c0_3 = arith.constant 0 : index
    %2 = vector.load %arg3[%c0_2, %c0_3] : memref<32x32xf32, #tpu.memory_space<vmem>>, vector<32x32xf32>
    %cst = arith.constant dense<0.000000e+00> : vector<64x32xf32>
    %3 = tpu.matmul %1, %2, %cst {dimension_numbers = #tpu.dot_dimension_numbers<[1], [0], [0], [1], [0, 0, 1, 1], [], []>} : vector<64x32xf32>, vector<32x32xf32>, vector<64x32xf32> -> vector<64x32xf32>
    %4 = vector.shape_cast %3 : vector<64x32xf32> to vector<8x8x32xf32>
    %c0_4 = arith.constant 0 : index
    %c0_5 = arith.constant 0 : index
    %5 = vector.load %arg2[%c0_4, %c0_5] : memref<8x32xf32, #tpu.memory_space<vmem>>, vector<8x32xf32>
    %6 = vector.shape_cast %5 : vector<8x32xf32> to vector<8x1x32xf32>
    %7 = vector.broadcast %6 : vector<8x1x32xf32> to vector<8x8x32xf32>
    %8 = arith.addf %4, %7 : vector<8x8x32xf32>
    %9 = math.tanh %8 : vector<8x8x32xf32>
    %c0_6 = arith.constant 0 : index
    %c0_7 = arith.constant 0 : index
    %10 = vector.load %arg4[%c0_6, %c0_7] : memref<1x32xf32, #tpu.memory_space<vmem>>, vector<1x32xf32>
    %11 = vector.shape_cast %10 : vector<1x32xf32> to vector<1x1x32xf32>
    %12 = vector.broadcast %11 : vector<1x1x32xf32> to vector<8x8x32xf32>
    %13 = arith.mulf %9, %12 : vector<8x8x32xf32>
    %cst_8 = arith.constant dense<0.000000e+00> : vector<8x8xf32>
    %14 = vector.multi_reduction <add>, %13, %cst_8 [2] : vector<8x8x32xf32> to vector<8x8xf32>
    %c0_9 = arith.constant 0 : index
    %c0_10 = arith.constant 0 : index
    %15 = vector.load %arg5[%c0_9, %c0_10] : memref<8x8xf32, #tpu.memory_space<vmem>>, vector<8x8xf32>
    %cst_11 = arith.constant 0.000000e+00 : f32
    %16 = vector.broadcast %cst_11 : f32 to vector<8x8xf32>
    %17 = arith.cmpf oeq, %15, %16 : vector<8x8xf32>
    %cst_12 = arith.constant -1.000000e+10 : f32
    %18 = vector.broadcast %cst_12 : f32 to vector<8x8xf32>
    %19 = arith.select %17, %18, %14 : vector<8x8xi1>, vector<8x8xf32>
    %cst_13 = arith.constant dense<0xFF800000> : vector<8xf32>
    %20 = vector.multi_reduction <maximumf>, %19, %cst_13 [1] : vector<8x8xf32> to vector<8xf32>
    %21 = vector.shape_cast %20 : vector<8xf32> to vector<8x1xf32>
    %22 = vector.broadcast %21 : vector<8x1xf32> to vector<8x8xf32>
    %23 = arith.subf %19, %22 : vector<8x8xf32>
    %24 = math.exp %23 : vector<8x8xf32>
    %cst_14 = arith.constant dense<0.000000e+00> : vector<8xf32>
    %25 = vector.multi_reduction <add>, %24, %cst_14 [1] : vector<8x8xf32> to vector<8xf32>
    %26 = vector.shape_cast %25 : vector<8xf32> to vector<8x1xf32>
    %27 = tpu.reciprocal %26 {approx = true} : vector<8x1xf32> -> vector<8x1xf32>
    %28 = arith.mulf %26, %27 : vector<8x1xf32>
    %cst_15 = arith.constant 2.000000e+00 : f32
    %29 = vector.broadcast %cst_15 : f32 to vector<8x1xf32>
    %30 = arith.subf %29, %28 : vector<8x1xf32>
    %31 = arith.mulf %27, %30 : vector<8x1xf32>
    %32 = vector.broadcast %31 : vector<8x1xf32> to vector<8x8xf32>
    %33 = arith.mulf %24, %32 : vector<8x8xf32>
    %c0_16 = arith.constant 0 : index
    %c0_17 = arith.constant 0 : index
    %34 = vector.load %arg6[%c0_16, %c0_17] : memref<8x8xf32, #tpu.memory_space<vmem>>, vector<8x8xf32>
    tpu.vector_store %arg6[%c0_16, %c0_17], %33 {strides = array<i32>} : memref<8x8xf32, #tpu.memory_space<vmem>>, vector<8x8xf32>,
    return
  }
  func.func @transform_0(%arg0: i32) -> (i32, i32, i32) {
    %c0_i32 = arith.constant 0 : i32
    %c0_i32_0 = arith.constant 0 : i32
    %c0_i32_1 = arith.constant 0 : i32
    return %arg0, %c0_i32, %c0_i32_0 : i32, i32, i32
  }
  func.func @transform_1(%arg0: i32) -> (i32, i32) {
    %c0_i32 = arith.constant 0 : i32
    %c0_i32_0 = arith.constant 0 : i32
    return %arg0, %c0_i32 : i32, i32
  }
  func.func @transform_2(%arg0: i32) -> (i32, i32) {
    %c0_i32 = arith.constant 0 : i32
    %c0_i32_0 = arith.constant 0 : i32
    %c0_i32_1 = arith.constant 0 : i32
    return %c0_i32, %c0_i32_0 : i32, i32
  }
  func.func @transform_3(%arg0: i32) -> (i32, i32) {
    %c0_i32 = arith.constant 0 : i32
    %c0_i32_0 = arith.constant 0 : i32
    %c0_i32_1 = arith.constant 0 : i32
    return %c0_i32, %c0_i32_0 : i32, i32
  }
  func.func @transform_4(%arg0: i32) -> (i32, i32) {
    %c0_i32 = arith.constant 0 : i32
    %c0_i32_0 = arith.constant 0 : i32
    return %arg0, %c0_i32 : i32, i32
  }
  func.func @transform_5(%arg0: i32) -> (i32, i32) {
    %c0_i32 = arith.constant 0 : i32
    %c0_i32_0 = arith.constant 0 : i32
    return %arg0, %c0_i32 : i32, i32
  }
}

module attributes {stable_mosaic.version = 11 : i64} {
  func.func @attention_kernel(%arg0: i32, %arg1: memref<8x8x32xf32, #tpu.memory_space<vmem>>, %arg2: memref<8x32xf32, #tpu.memory_space<vmem>>, %arg3: memref<32x32xf32, #tpu.memory_space<vmem>>, %arg4: memref<1x32xf32, #tpu.memory_space<vmem>>, %arg5: memref<8x8xf32, #tpu.memory_space<vmem>>, %arg6: memref<8x8xf32, #tpu.memory_space<vmem>>) attributes {dimension_semantics = [#tpu.dimension_semantics<parallel>], iteration_bounds = array<i64: 1>, scalar_prefetch = 0 : i64, scratch_operands = 0 : i64, tpu.core_type = #tpu.core_type<tc>, window_params = [{transform_indices = @transform_0, window_bounds = array<i64: 8, 8, 32>}, {transform_indices = @transform_1, window_bounds = array<i64: 8, 32>}, {pipeline_mode = #tpu.pipeline_mode<synchronous>, transform_indices = @transform_2, window_bounds = array<i64: 32, 32>}, {pipeline_mode = #tpu.pipeline_mode<synchronous>, transform_indices = @transform_3, window_bounds = array<i64: 1, 32>}, {transform_indices = @transform_4, window_bounds = array<i64: 8, 8>}, {transform_indices = @transform_5, window_bounds = array<i64: 8, 8>}]} {
    %c0 = arith.constant 0 : index
    %c0_0 = arith.constant 0 : index
    %c0_1 = arith.constant 0 : index
    %0 = vector.load %arg1[%c0, %c0_0, %c0_1] : memref<8x8x32xf32, #tpu.memory_space<vmem>>, vector<8x8x32xf32>
    %1 = vector.shape_cast %0 : vector<8x8x32xf32> to vector<64x32xf32>
    %c0_2 = arith.constant 0 : index
    %c0_3 = arith.constant 0 : index
    %2 = vector.load %arg3[%c0_2, %c0_3] : memref<32x32xf32, #tpu.memory_space<vmem>>, vector<32x32xf32>
    %cst = arith.constant dense<0.000000e+00> : vector<64x32xf32>
    %3 = tpu.matmul %1, %2, %cst {dimension_numbers = #tpu.dot_dimension_numbers<[1], [0], [0], [1], [0, 0, 1, 1], [], []>} : vector<64x32xf32>, vector<32x32xf32>, vector<64x32xf32> -> vector<64x32xf32>
    %4 = vector.shape_cast %3 : vector<64x32xf32> to vector<8x8x32xf32>
    %c0_4 = arith.constant 0 : index
    %c0_5 = arith.constant 0 : index
    %5 = vector.load %arg2[%c0_4, %c0_5] : memref<8x32xf32, #tpu.memory_space<vmem>>, vector<8x32xf32>
    %6 = vector.shape_cast %5 : vector<8x32xf32> to vector<8x1x32xf32>
    %7 = vector.broadcast %6 : vector<8x1x32xf32> to vector<8x8x32xf32>
    %8 = arith.addf %4, %7 : vector<8x8x32xf32>
    %9 = math.tanh %8 : vector<8x8x32xf32>
    %c0_6 = arith.constant 0 : index
    %c0_7 = arith.constant 0 : index
    %10 = vector.load %arg4[%c0_6, %c0_7] : memref<1x32xf32, #tpu.memory_space<vmem>>, vector<1x32xf32>
    %11 = vector.shape_cast %10 : vector<1x32xf32> to vector<1x1x32xf32>
    %12 = vector.broadcast %11 : vector<1x1x32xf32> to vector<8x8x32xf32>
    %13 = arith.mulf %9, %12 : vector<8x8x32xf32>
    %cst_8 = arith.constant dense<0.000000e+00> : vector<8x8xf32>
    %14 = vector.multi_reduction <add>, %13, %cst_8 [2] : vector<8x8x32xf32> to vector<8x8xf32>
    %c0_9 = arith.constant 0 : index
    %c0_10 = arith.constant 0 : index
    %15 = vector.load %arg5[%c0_9, %c0_10] : memref<8x8xf32, #tpu.memory_space<vmem>>, vector<8x8xf32>
    %cst_11 = arith.constant 0.000000e+00 : f32
    %16 = vector.broadcast %cst_11 : f32 to vector<8x8xf32>
    %17 = arith.cmpf oeq, %15, %16 : vector<8x8xf32>
    %cst_12 = arith.constant -1.000000e+10 : f32
    %18 = vector.broadcast %cst_12 : f32 to vector<8x8xf32>
    %19 = arith.select %17, %18, %14 : vector<8x8xi1>, vector<8x8xf32>
    %cst_13 = arith.constant dense<0xFF800000> : vector<8xf32>
    %20 = vector.multi_reduction <maximumf>, %19, %cst_13 [1] : vector<8x8xf32> to vector<8xf32>
    %21 = vector.shape_cast %20 : vector<8xf32> to vector<8x1xf32>
    %22 = vector.broadcast %21 : vector<8x1xf32> to vector<8x8xf32>
    %23 = arith.subf %19, %22 : vector<8x8xf32>
    %24 = math.exp %23 : vector<8x8xf32>
    %cst_14 = arith.constant dense<0.000000e+00> : vector<8xf32>
    %25 = vector.multi_reduction <add>, %24, %cst_14 [1] : vector<8x8xf32> to vector<8xf32>
    %26 = vector.shape_cast %25 : vector<8xf32> to vector<8x1xf32>
    %27 = tpu.reciprocal %26 {approx = true} : vector<8x1xf32> -> vector<8x1xf32>
    %28 = arith.mulf %26, %27 : vector<8x1xf32>
    %cst_15 = arith.constant 2.000000e+00 : f32
    %29 = vector.broadcast %cst_15 : f32 to vector<8x1xf32>
    %30 = arith.subf %29, %28 : vector<8x1xf32>
    %31 = arith.mulf %27, %30 : vector<8x1xf32>
    %32 = vector.broadcast %31 : vector<8x1xf32> to vector<8x8xf32>
    %33 = arith.mulf %24, %32 : vector<8x8xf32>
    %c0_16 = arith.constant 0 : index
    %c0_17 = arith.constant 0 : index
    %34 = vector.load %arg6[%c0_16, %c0_17] : memref<8x8xf32, #tpu.memory_space<vmem>>, vector<8x8xf32>
    tpu.vector_store %arg6[%c0_16, %c0_17], %33 {strides = array<i32>} : memref<8x8xf32, #tpu.memory_space<vmem>>, vector<8x8xf32>,
    return
  }
  func.func @transform_0(%arg0: i32) -> (i32, i32, i32) {
    %c0_i32 = arith.constant 0 : i32
    %c0_i32_0 = arith.constant 0 : i32
    %c0_i32_1 = arith.constant 0 : i32
    return %arg0, %c0_i32, %c0_i32_0 : i32, i32, i32
  }
  func.func @transform_1(%arg0: i32) -> (i32, i32) {
    %c0_i32 = arith.constant 0 : i32
    %c0_i32_0 = arith.constant 0 : i32
    return %arg0, %c0_i32 : i32, i32
  }
  func.func @transform_2(%arg0: i32) -> (i32, i32) {
    %c0_i32 = arith.constant 0 : i32
    %c0_i32_0 = arith.constant 0 : i32
    %c0_i32_1 = arith.constant 0 : i32
    return %c0_i32, %c0_i32_0 : i32, i32
  }
  func.func @transform_3(%arg0: i32) -> (i32, i32) {
    %c0_i32 = arith.constant 0 : i32
    %c0_i32_0 = arith.constant 0 : i32
    %c0_i32_1 = arith.constant 0 : i32
    return %c0_i32, %c0_i32_0 : i32, i32
  }
  func.func @transform_4(%arg0: i32) -> (i32, i32) {
    %c0_i32 = arith.constant 0 : i32
    %c0_i32_0 = arith.constant 0 : i32
    return %arg0, %c0_i32 : i32, i32
  }
  func.func @transform_5(%arg0: i32) -> (i32, i32) {
    %c0_i32 = arith.constant 0 : i32
    %c0_i32_0 = arith.constant 0 : i32
    return %arg0, %c0_i32 : i32, i32
  }
}

</mosaic_0001>

<llo_original>
// kernel: tpu_custom_call.1
$region0: #{tpu_custom_call.1}
  #allocation0 [shape = 'u32[]', space=smem, size = 0x4, offset = 0x4, fixed_abs, tag = 'smem constant byte address 0x4 - core index']
  #allocation1 [shape = 'u32[144,128]{1,0:T(1,128)}', space=vmem, size = 0x12000, scoped, tag = 'internal scratch']
  %s0 = inlined_call_operand.hbm [shape: f32[8,8,32], index: 0, kind: input, shape index: {}]
  %s1 = inlined_call_operand.hbm [shape: f32[8,32], index: 1, kind: input, shape index: {}]
  %s2 = inlined_call_operand.hbm [shape: f32[32,32], index: 2, kind: input, shape index: {}]
  %s3 = inlined_call_operand.vmem [shape: f32[1,32], index: 3, kind: input, shape index: {}]
  %s4 = inlined_call_operand.hbm [shape: f32[8,8], index: 4, kind: input, shape index: {}]
  %s5 = inlined_call_operand.hbm [shape: f32[8,8], index: 5, kind: output, shape index: {}]
  %s6 = sld [smem:[#allocation0]]
  $region46: #{tpu_custom_call.1} parent=0
    _
  %s8 = ssub.s32 1, %s6
  %s9 = scalar_select 0, %s8, %s6
  $region1: #{tpu_custom_call.1} parent=0
    #allocation2 [shape = 'u8[32768]{0}', space=vmem, size = 0x8000, scoped, tag = 'input window, operand 0, single buffered']
    #allocation3 [shape = 's32[1]{0}', space=sflag, size = 0x4, scoped, tag = 'scoped memory for tpu_custom_call.1']
    #allocation4 [shape = 's32[1]{0}', space=sflag, size = 0x4, scoped, tag = 'scoped memory for tpu_custom_call.1']
    #allocation5 [shape = 'u8[4096]{0}', space=vmem, size = 0x1000, scoped, tag = 'input window, operand 1, single buffered']
    #allocation6 [shape = 's32[1]{0}', space=sflag, size = 0x4, scoped, tag = 'scoped memory for tpu_custom_call.1']
    #allocation7 [shape = 'u8[16384]{0}', space=vmem, size = 0x4000, scoped, tag = 'input window, operand 2, single buffered']
    #allocation8 [shape = 'u8[4096]{0}', space=vmem, size = 0x1000, scoped, tag = 'input window, operand 4, single buffered']
    #allocation9 [shape = 's32[1]{0}', space=sflag, size = 0x4, scoped, tag = 'scoped memory for tpu_custom_call.1']
    #allocation10 [shape = 'u8[4096]{0}', space=vmem, size = 0x1000, scoped, tag = 'output window, operand 0, single buffered']
    %10 = vsyncpa [#allocation3], 0
    %11 = vsyncpa [#allocation6], 0
    %12 = vsyncpa [#allocation9], 0
    %13 = vsyncpa [#allocation4], 0
    // Predicated region
    $region2: #{tpu_custom_call.1} parent=1 // pred_check
      _
    $region3: #{tpu_custom_call.1} parent=1 // pred_check_branch
      %15 = sbr.rel (0) target = $region5
    $region4: #{tpu_custom_call.1} parent=1 // pred_region
      %s17 = ssub.s32 1024, 1024
      %18 = vsyncadd [#allocation3], %s17
      %s19 = sshll.u32 [#allocation2], 4
      %s20 = int_to_ptr.vmem [resolvable:$true] %s19
      %25 = dma.hbm_to_vmem [thread:$0]  %s0, 1024, %s20, [#allocation3], 128, 128, 8
    $region5: #{tpu_custom_call.1} parent=1 // pred_fallthru
      _
    // Predicated region
    $region6: #{tpu_custom_call.1} parent=1 // pred_check
      _
    $region7: #{tpu_custom_call.1} parent=1 // pred_check_branch
      %27 = sbr.rel (0) target = $region9
    $region8: #{tpu_custom_call.1} parent=1 // pred_region
      %s29 = ssub.s32 128, 128
      %30 = vsyncadd [#allocation6], %s29
      %s32 = sshll.u32 [#allocation5], 4
      %s33 = int_to_ptr.vmem [resolvable:$true] %s32
      %35 = dma.hbm_to_vmem [thread:$0]  %s1, 128, %s33, [#allocation6]
    $region9: #{tpu_custom_call.1} parent=1 // pred_fallthru
      _
    // Predicated region
    $region10: #{tpu_custom_call.1} parent=1 // pred_check
      _
    $region11: #{tpu_custom_call.1} parent=1 // pred_check_branch
      %37 = sbr.rel (0) target = $region13
    $region12: #{tpu_custom_call.1} parent=1 // pred_region
      %s39 = ssub.s32 512, 512
      %40 = vsyncadd [#allocation6], %s39
      %s41 = sshll.u32 [#allocation7], 4
      %s42 = int_to_ptr.vmem [resolvable:$true] %s41
      %47 = dma.hbm_to_vmem [thread:$0]  %s2, 512, %s42, [#allocation6], 128, 128, 8
    $region13: #{tpu_custom_call.1} parent=1 // pred_fallthru
      _
    // Predicated region
    $region14: #{tpu_custom_call.1} parent=1 // pred_check
      _
    $region15: #{tpu_custom_call.1} parent=1 // pred_check_branch
      %49 = sbr.rel (0) target = $region17
    $region16: #{tpu_custom_call.1} parent=1 // pred_region
      _
    $region17: #{tpu_custom_call.1} parent=1 // pred_fallthru
      _
    // Predicated region
    $region18: #{tpu_custom_call.1} parent=1 // pred_check
      _
    $region19: #{tpu_custom_call.1} parent=1 // pred_check_branch
      %51 = sbr.rel (0) target = $region21
    $region20: #{tpu_custom_call.1} parent=1 // pred_region
      %s53 = ssub.s32 128, 128
      %54 = vsyncadd [#allocation9], %s53
      %s56 = sshll.u32 [#allocation8], 4
      %s57 = int_to_ptr.vmem [resolvable:$true] %s56
      %59 = dma.hbm_to_vmem [thread:$0]  %s4, 128, %s57, [#allocation9]
    $region21: #{tpu_custom_call.1} parent=1 // pred_fallthru
      _
    // Predicated region
    $region22: #{tpu_custom_call.1} parent=1 // pred_check
      _
    $region23: #{tpu_custom_call.1} parent=1 // pred_check_branch
      %61 = sbr.rel (0) target = $region25
    $region24: #{tpu_custom_call.1} parent=1 // pred_region
      %62 = dma.done [#allocation3], 1024
    $region25: #{tpu_custom_call.1} parent=1 // pred_fallthru
      _
    // Predicated region
    $region26: #{tpu_custom_call.1} parent=1 // pred_check
      _
    $region27: #{tpu_custom_call.1} parent=1 // pred_check_branch
      %64 = sbr.rel (0) target = $region29
    $region28: #{tpu_custom_call.1} parent=1 // pred_region
      %65 = dma.done [#allocation6], 128
    $region29: #{tpu_custom_call.1} parent=1 // pred_fallthru
      _
    // Predicated region
    $region30: #{tpu_custom_call.1} parent=1 // pred_check
      _
    $region31: #{tpu_custom_call.1} parent=1 // pred_check_branch
      %67 = sbr.rel (0) target = $region33
    $region32: #{tpu_custom_call.1} parent=1 // pred_region
      %68 = dma.done [#allocation6], 512
    $region33: #{tpu_custom_call.1} parent=1 // pred_fallthru
      _
    // Predicated region
    $region34: #{tpu_custom_call.1} parent=1 // pred_check
      _
    $region35: #{tpu_custom_call.1} parent=1 // pred_check_branch
      %70 = sbr.rel (0) target = $region37
    $region36: #{tpu_custom_call.1} parent=1 // pred_region
      %71 = dma.done [#allocation9], 128
    $region37: #{tpu_custom_call.1} parent=1 // pred_fallthru
      _
    %v72 = vld [vmem:[#allocation2] sm:$0xff]
    %v73 = vld [vmem:[#allocation2 + $0x8] sm:$0xff]
    %v74 = vld [vmem:[#allocation2 + $0x10] sm:$0xff]
    %v75 = vld [vmem:[#allocation2 + $0x18] sm:$0xff]
    %v76 = vld [vmem:[#allocation2 + $0x20] sm:$0xff]
    %v77 = vld [vmem:[#allocation2 + $0x28] sm:$0xff]
    %v78 = vld [vmem:[#allocation2 + $0x30] sm:$0xff]
    %v79 = vld [vmem:[#allocation2 + $0x38] sm:$0xff]
    %v80 = vld [vmem:[#allocation7] sm:$0xff]
    %v81 = vld [vmem:[#allocation7 + $0x8] sm:$0xff]
    %v82 = vld [vmem:[#allocation7 + $0x10] sm:$0xff]
    %v83 = vld [vmem:[#allocation7 + $0x18] sm:$0xff]
    %vm84 = vcmask 261120
    %v86 = vsel %vm84, %v72, 0
    %v89 = vsel %vm84, %v73, 0
    %v92 = vsel %vm84, %v74, 0
    %v95 = vsel %vm84, %v75, 0
    %v98 = vsel %vm84, %v76, 0
    %v101 = vsel %vm84, %v77, 0
    %v104 = vsel %vm84, %v78, 0
    %v107 = vsel %vm84, %v79, 0
    %109 = vmatprep.subr.mxu0 0.0
    %110 = vmatpush1.msra.mxu0 0.0
    %111 = vmatprep.subr.mxu0 0.0
    %112 = vmatpush1.msra.mxu0 0.0
    %113 = vmatprep.subr.mxu0 0.0
    %114 = vmatpush1.msra.mxu0 0.0
    %115 = vmatprep.subr.mxu0 0.0
    %116 = vmatpush1.msra.mxu0 0.0
    %117 = vmatprep.subr.mxu0 0.0
    %118 = vmatpush1.msra.mxu0 0.0
    %119 = vmatprep.subr.mxu0 0.0
    %120 = vmatpush1.msra.mxu0 0.0
    %121 = vmatprep.subr.mxu0 0.0
    %122 = vmatpush1.msra.mxu0 0.0
    %123 = vmatprep.subr.mxu0 0.0
    %124 = vmatpush1.msra.mxu0 0.0
    %125 = vmatprep.subr.mxu0 0.0
    %126 = vmatpush1.msra.mxu0 0.0
    %127 = vmatprep.subr.mxu0 0.0
    %128 = vmatpush1.msra.mxu0 0.0
    %129 = vmatprep.subr.mxu0 0.0
    %130 = vmatpush1.msra.mxu0 0.0
    %131 = vmatprep.subr.mxu0 0.0
    %132 = vmatpush1.msra.mxu0 0.0
    %133 = vmatprep.subr.mxu0 0.0
    %134 = vmatpush1.msra.mxu0 %v83
    %135 = vmatprep.subr.mxu0 0.0
    %136 = vmatpush1.msra.mxu0 %v82
    %137 = vmatprep.subr.mxu0 0.0
    %138 = vmatpush1.msra.mxu0 %v81
    %139 = vmatprep.subr.mxu0 0.0
    %140 = vmatpush1.msra.mxu0 %v80
    %141 = vmatprep.subr.mxu0 0.0
    %142 = vmatpush2.msra.mxu0 0.0
    %143 = vmatprep.subr.mxu0 0.0
    %144 = vmatpush2.msra.mxu0 0.0
    %145 = vmatprep.subr.mxu0 0.0
    %146 = vmatpush2.msra.mxu0 0.0
    %147 = vmatprep.subr.mxu0 0.0
    %148 = vmatpush2.msra.mxu0 0.0
    %149 = vmatprep.subr.mxu0 0.0
    %150 = vmatpush2.msra.mxu0 0.0
    %151 = vmatprep.subr.mxu0 0.0
    %152 = vmatpush2.msra.mxu0 0.0
    %153 = vmatprep.subr.mxu0 0.0
    %154 = vmatpush2.msra.mxu0 0.0
    %155 = vmatprep.subr.mxu0 0.0
    %156 = vmatpush2.msra.mxu0 0.0
    %157 = vmatprep.subr.mxu0 0.0
    %158 = vmatpush2.msra.mxu0 0.0
    %159 = vmatprep.subr.mxu0 0.0
    %160 = vmatpush2.msra.mxu0 0.0
    %161 = vmatprep.subr.mxu0 0.0
    %162 = vmatpush2.msra.mxu0 0.0
    %163 = vmatprep.subr.mxu0 0.0
    %164 = vmatpush2.msra.mxu0 0.0
    %165 = vmatprep.subr.mxu0 0.0
    %166 = vmatpush2.msra.mxu0 0.0
    %167 = vmatprep.subr.mxu0 0.0
    %168 = vmatpush2.msra.mxu0 0.0
    %169 = vmatprep.subr.mxu0 0.0
    %170 = vmatpush2.msra.mxu0 0.0
    %171 = vmatprep.subr.mxu0 0.0
    %172 = vmatpush2.msra.mxu0 0.0
    %173 = vmatprep.mubr.f32.mxu0 0.0
    %174 = vmatmul.mubr.f32.gmra.mxu0 %v86
    %v175 = vpop.f32.mrf.mxu0
    %v176 = vadd.f32 0.0, %v175
    %v177 = vpop.f32.mrf.mxu0
    %178 = vmatprep.mubr.f32.mxu0 0.0
    %179 = vmatmul.mubr.f32.gmra.mxu0 %v89
    %v180 = vpop.f32.mrf.mxu0
    %v181 = vadd.f32 0.0, %v180
    %v182 = vpop.f32.mrf.mxu0
    %183 = vmatprep.mubr.f32.mxu0 0.0
    %184 = vmatmul.mubr.f32.gmra.mxu0 %v92
    %v185 = vpop.f32.mrf.mxu0
    %v186 = vadd.f32 0.0, %v185
    %v187 = vpop.f32.mrf.mxu0
    %188 = vmatprep.mubr.f32.mxu0 0.0
    %189 = vmatmul.mubr.f32.gmra.mxu0 %v95
    %v190 = vpop.f32.mrf.mxu0
    %v191 = vadd.f32 0.0, %v190
    %v192 = vpop.f32.mrf.mxu0
    %193 = vmatprep.mubr.f32.mxu0 0.0
    %194 = vmatmul.mubr.f32.gmra.mxu0 %v98
    %v195 = vpop.f32.mrf.mxu0
    %v196 = vadd.f32 0.0, %v195
    %v197 = vpop.f32.mrf.mxu0
    %198 = vmatprep.mubr.f32.mxu0 0.0
    %199 = vmatmul.mubr.f32.gmra.mxu0 %v101
    %v200 = vpop.f32.mrf.mxu0
    %v201 = vadd.f32 0.0, %v200
    %v202 = vpop.f32.mrf.mxu0
    %203 = vmatprep.mubr.f32.mxu0 0.0
    %204 = vmatmul.mubr.f32.gmra.mxu0 %v104
    %v205 = vpop.f32.mrf.mxu0
    %v206 = vadd.f32 0.0, %v205
    %v207 = vpop.f32.mrf.mxu0
    %208 = vmatprep.mubr.f32.mxu0 0.0
    %209 = vmatmul.mubr.f32.gmra.mxu0 %v107
    %v210 = vpop.f32.mrf.mxu0
    %v211 = vadd.f32 0.0, %v210
    %v212 = vpop.f32.mrf.mxu0
    %213 = vdwg.mxu0
    %v214 = vld [vmem:[#allocation5] sm:$0xff]
    %v216 = vcombine.high %v214, %v214
    %v218 = vunpack.c.l.s4 1966171168
    %v219 = vunpack.c.0.s8 %v218
    %v220 = vlaneseq
    %v221 = vshrl.u32 %v220, 7
    %v222 = vsub.s32 %v219, %v221
    %v223 = vrot.slane %v214, %v222
    %v225 = vunpack.c.l.s4 1966171168
    %v226 = vunpack.c.0.s8 %v225
    %v227 = vlaneseq
    %v228 = vshrl.u32 %v227, 7
    %v229 = vsub.s32 %v226, %v228
    %v230 = vrot.slane %v216, %v229
    %v231 = vcombine.high %v223, %v223
    %v232 = vcombine.high %v230, %v230
    %v234 = vunpack.c.l.s4 1966171168
    %v235 = vunpack.c.0.s8 %v234
    %v236 = vlaneseq
    %v237 = vshrl.u32 %v236, 7
    %v238 = vsub.s32 %v235, %v237
    %v239 = vrot.slane %v223, %v238
    %v241 = vunpack.c.l.s4 1966171168
    %v242 = vunpack.c.0.s8 %v241
    %v243 = vlaneseq
    %v244 = vshrl.u32 %v243, 7
    %v245 = vsub.s32 %v242, %v244
    %v246 = vrot.slane %v230, %v245
    %v248 = vunpack.c.l.s4 1966171168
    %v249 = vunpack.c.0.s8 %v248
    %v250 = vlaneseq
    %v251 = vshrl.u32 %v250, 7
    %v252 = vsub.s32 %v249, %v251
    %v253 = vrot.slane %v231, %v252
    %v255 = vunpack.c.l.s4 1966171168
    %v256 = vunpack.c.0.s8 %v255
    %v257 = vlaneseq
    %v258 = vshrl.u32 %v257, 7
    %v259 = vsub.s32 %v256, %v258
    %v260 = vrot.slane %v232, %v259
    %v261 = vcombine.high %v239, %v239
    %v262 = vcombine.high %v246, %v246
    %v263 = vcombine.high %v253, %v253
    %v264 = vcombine.high %v260, %v260
    %v265 = vlaneseq
    %v266 = vshrl.u32 %v265, 7
    %v267 = vsub.s32 0, %v266
    %v268 = vrot.slane %v239, %v267
    %v269 = vlaneseq
    %v270 = vshrl.u32 %v269, 7
    %v271 = vsub.s32 0, %v270
    %v272 = vrot.slane %v253, %v271
    %v273 = vlaneseq
    %v274 = vshrl.u32 %v273, 7
    %v275 = vsub.s32 0, %v274
    %v276 = vrot.slane %v261, %v275
    %v277 = vlaneseq
    %v278 = vshrl.u32 %v277, 7
    %v279 = vsub.s32 0, %v278
    %v280 = vrot.slane %v263, %v279
    %v281 = vlaneseq
    %v282 = vshrl.u32 %v281, 7
    %v283 = vsub.s32 0, %v282
    %v284 = vrot.slane %v246, %v283
    %v285 = vlaneseq
    %v286 = vshrl.u32 %v285, 7
    %v287 = vsub.s32 0, %v286
    %v288 = vrot.slane %v260, %v287
    %v289 = vlaneseq
    %v290 = vshrl.u32 %v289, 7
    %v291 = vsub.s32 0, %v290
    %v292 = vrot.slane %v262, %v291
    %v293 = vlaneseq
    %v294 = vshrl.u32 %v293, 7
    %v295 = vsub.s32 0, %v294
    %v296 = vrot.slane %v264, %v295
    %v305 = vadd.f32 %v176, %v268
    %v306 = vadd.f32 %v181, %v272
    %v307 = vadd.f32 %v186, %v276
    %v308 = vadd.f32 %v191, %v280
    %v309 = vadd.f32 %v196, %v284
    %v310 = vadd.f32 %v201, %v288
    %v311 = vadd.f32 %v206, %v292
    %v312 = vadd.f32 %v211, %v296
    %v313 = vtanh.pop %v305
    %v314 = vtanh.pop %v306
    %v315 = vtanh.pop %v307
    %v316 = vtanh.pop %v308
    %v317 = vtanh.pop %v309
    %v318 = vtanh.pop %v310
    %v319 = vtanh.pop %v311
    %v320 = vtanh.pop %v312
    %v321 = vld [vmem:[%s3] sm:$0x1]
    %v323 = vlaneseq
    %v324 = vshrl.u32 %v323, 7
    %v325 = vsub.s32 0, %v324
    %v326 = vrot.slane %v321, %v325
    %v328 = vmul.f32 %v313, %v326
    %v329 = vmul.f32 %v314, %v326
    %v330 = vmul.f32 %v315, %v326
    %v331 = vmul.f32 %v316, %v326
    %v332 = vmul.f32 %v317, %v326
    %v333 = vmul.f32 %v318, %v326
    %v334 = vmul.f32 %v319, %v326
    %v335 = vmul.f32 %v320, %v326
    %v336 = vsel %vm84, %v328, 0.0
    %337 = vadd.xlane.f32.xlu0 %v336
    %v338 = vpop.xlane.xlu0 %337
    %v339 = vsel %vm84, %v329, 0.0
    %340 = vadd.xlane.f32.xlu0 %v339
    %v341 = vpop.xlane.xlu0 %340
    %v342 = vsel %vm84, %v330, 0.0
    %343 = vadd.xlane.f32.xlu0 %v342
    %v344 = vpop.xlane.xlu0 %343
    %v345 = vsel %vm84, %v331, 0.0
    %346 = vadd.xlane.f32.xlu0 %v345
    %v347 = vpop.xlane.xlu0 %346
    %v348 = vsel %vm84, %v332, 0.0
    %349 = vadd.xlane.f32.xlu0 %v348
    %v350 = vpop.xlane.xlu0 %349
    %v351 = vsel %vm84, %v333, 0.0
    %352 = vadd.xlane.f32.xlu0 %v351
    %v353 = vpop.xlane.xlu0 %352
    %v354 = vsel %vm84, %v334, 0.0
    %355 = vadd.xlane.f32.xlu0 %v354
    %v356 = vpop.xlane.xlu0 %355
    %v357 = vsel %vm84, %v335, 0.0
    %358 = vadd.xlane.f32.xlu0 %v357
    %v359 = vpop.xlane.xlu0 %358
    %v360 = vld [vmem:[#allocation8] sm:$0xff]
    %vm361 = vcmp.eq.f32.partialorder %v360, 0.0
    %v370 = vlaneseq
    %v371 = vand.u32 %v370, 127
    %v372 = vlaneseq
    %v373 = vshrl.u32 %v372, 7
    %v374 = vsub.s32 %v371, %v373
    %v375 = vrot.slane %v338, %v374
    %v376 = vlaneseq
    %v377 = vshrl.u32 %v376, 7
    %v378 = vsub.s32 %v371, %v377
    %v379 = vrot.slane %v341, %v378
    %v380 = vlaneseq
    %v381 = vshrl.u32 %v380, 7
    %v382 = vsub.s32 %v371, %v381
    %v383 = vrot.slane %v344, %v382
    %v384 = vlaneseq
    %v385 = vshrl.u32 %v384, 7
    %v386 = vsub.s32 %v371, %v385
    %v387 = vrot.slane %v347, %v386
    %v388 = vlaneseq
    %v389 = vshrl.u32 %v388, 7
    %v390 = vsub.s32 %v371, %v389
    %v391 = vrot.slane %v350, %v390
    %v392 = vlaneseq
    %v393 = vshrl.u32 %v392, 7
    %v394 = vsub.s32 %v371, %v393
    %v395 = vrot.slane %v353, %v394
    %v396 = vlaneseq
    %v397 = vshrl.u32 %v396, 7
    %v398 = vsub.s32 %v371, %v397
    %v399 = vrot.slane %v356, %v398
    %v400 = vlaneseq
    %v401 = vshrl.u32 %v400, 7
    %v402 = vsub.s32 %v371, %v401
    %v403 = vrot.slane %v359, %v402
    %vm404 = vcmask 1041409
    %v405 = vsel %vm404, %v379, %v375
    %vm406 = vcmask 1042434
    %v407 = vsel %vm406, %v383, %v405
    %vm408 = vcmask 1043459
    %v409 = vsel %vm408, %v387, %v407
    %vm410 = vcmask 1044484
    %v411 = vsel %vm410, %v391, %v409
    %vm412 = vcmask 1045509
    %v413 = vsel %vm412, %v395, %v411
    %vm414 = vcmask 1046534
    %v415 = vsel %vm414, %v399, %v413
    %vm416 = vcmask 1047559
    %v417 = vsel %vm416, %v403, %v415
    %v419 = vsel %vm361, -1e+10, %v417
    %vm420 = vcmask 64512
    %v421 = vsel %vm420, %v419, -inf
    %422 = vmax.xlane.f32.xlu0 %v421
    %v423 = vpop.xlane.xlu0 %422
    %v424 = vsub.f32 %v419, %v423
    %v425 = vmul.f32 %v424, 1.442695
    %v426 = vpow.pop %v425
    %v427 = vsel %vm420, %v426, 0.0
    %428 = vadd.xlane.f32.xlu0 %v427
    %v429 = vpop.xlane.xlu0 %428
    %v430 = vrcp.pop %v429
    %v431 = vmul.f32 %v429, %v430
    %v432 = vsub.f32 2.0, %v431
    %v433 = vmul.f32 %v430, %v432
    %v434 = vmul.f32 %v426, %v433
    %435 = vst.msk [vmem:[#allocation10] sm:$0xff] %vm420, %v434
    // Predicated region
    $region38: #{tpu_custom_call.1} parent=1 // pred_check
      _
    $region39: #{tpu_custom_call.1} parent=1 // pred_check_branch
      %437 = sbr.rel (0) target = $region41
    $region40: #{tpu_custom_call.1} parent=1 // pred_region
      %s439 = ssub.s32 128, 128
      %440 = vsyncadd [#allocation4], %s439
      %s442 = sshll.u32 [#allocation10], 4
      %s443 = int_to_ptr.vmem [resolvable:$true] %s442
      %445 = dma.vmem_to_hbm [thread:$0]  %s443, 128, %s5, [#allocation4]
    $region41: #{tpu_custom_call.1} parent=1 // pred_fallthru
      _
    // Predicated region
    $region42: #{tpu_custom_call.1} parent=1 // pred_check
      _
    $region43: #{tpu_custom_call.1} parent=1 // pred_check_branch
      %447 = sbr.rel (0) target = $region45
    $region44: #{tpu_custom_call.1} parent=1 // pred_region
      %448 = dma.done [#allocation4], 128
    $region45: #{tpu_custom_call.1} parent=1 // pred_fallthru
      _
    %449 = vsyncpa [#allocation3], 1
    %450 = vsyncpa [#allocation6], 1
    %451 = vsyncpa [#allocation9], 1
    %452 = vsyncpa [#allocation4], 1

// kernel: tpu_custom_call.1
$region0: #{tpu_custom_call.1}
  #allocation0 [shape = 'u32[]', space=smem, size = 0x4, offset = 0x4, fixed_abs, tag = 'smem constant byte address 0x4 - core index']
  #allocation1 [shape = 'u32[144,128]{1,0:T(1,128)}', space=vmem, size = 0x12000, scoped, tag = 'internal scratch']
  %s0 = inlined_call_operand.hbm [shape: f32[8,8,32], index: 0, kind: input, shape index: {}]
  %s1 = inlined_call_operand.hbm [shape: f32[8,32], index: 1, kind: input, shape index: {}]
  %s2 = inlined_call_operand.hbm [shape: f32[32,32], index: 2, kind: input, shape index: {}]
  %s3 = inlined_call_operand.vmem [shape: f32[1,32], index: 3, kind: input, shape index: {}]
  %s4 = inlined_call_operand.hbm [shape: f32[8,8], index: 4, kind: input, shape index: {}]
  %s5 = inlined_call_operand.hbm [shape: f32[8,8], index: 5, kind: output, shape index: {}]
  %s6 = sld [smem:[#allocation0]]
  $region46: #{tpu_custom_call.1} parent=0
    _
  %s8 = ssub.s32 1, %s6
  %s9 = scalar_select 0, %s8, %s6
  $region1: #{tpu_custom_call.1} parent=0
    #allocation2 [shape = 'u8[32768]{0}', space=vmem, size = 0x8000, scoped, tag = 'input window, operand 0, single buffered']
    #allocation3 [shape = 's32[1]{0}', space=sflag, size = 0x4, scoped, tag = 'scoped memory for tpu_custom_call.1']
    #allocation4 [shape = 's32[1]{0}', space=sflag, size = 0x4, scoped, tag = 'scoped memory for tpu_custom_call.1']
    #allocation5 [shape = 'u8[4096]{0}', space=vmem, size = 0x1000, scoped, tag = 'input window, operand 1, single buffered']
    #allocation6 [shape = 's32[1]{0}', space=sflag, size = 0x4, scoped, tag = 'scoped memory for tpu_custom_call.1']
    #allocation7 [shape = 'u8[16384]{0}', space=vmem, size = 0x4000, scoped, tag = 'input window, operand 2, single buffered']
    #allocation8 [shape = 'u8[4096]{0}', space=vmem, size = 0x1000, scoped, tag = 'input window, operand 4, single buffered']
    #allocation9 [shape = 's32[1]{0}', space=sflag, size = 0x4, scoped, tag = 'scoped memory for tpu_custom_call.1']
    #allocation10 [shape = 'u8[4096]{0}', space=vmem, size = 0x1000, scoped, tag = 'output window, operand 0, single buffered']
    %10 = vsyncpa [#allocation3], 0
    %11 = vsyncpa [#allocation6], 0
    %12 = vsyncpa [#allocation9], 0
    %13 = vsyncpa [#allocation4], 0
    // Predicated region
    $region2: #{tpu_custom_call.1} parent=1 // pred_check
      _
    $region3: #{tpu_custom_call.1} parent=1 // pred_check_branch
      %15 = sbr.rel (0) target = $region5
    $region4: #{tpu_custom_call.1} parent=1 // pred_region
      %s17 = ssub.s32 1024, 1024
      %18 = vsyncadd [#allocation3], %s17
      %s19 = sshll.u32 [#allocation2], 4
      %s20 = int_to_ptr.vmem [resolvable:$true] %s19
      %25 = dma.hbm_to_vmem [thread:$0]  %s0, 1024, %s20, [#allocation3], 128, 128, 8
    $region5: #{tpu_custom_call.1} parent=1 // pred_fallthru
      _
    // Predicated region
    $region6: #{tpu_custom_call.1} parent=1 // pred_check
      _
    $region7: #{tpu_custom_call.1} parent=1 // pred_check_branch
      %27 = sbr.rel (0) target = $region9
    $region8: #{tpu_custom_call.1} parent=1 // pred_region
      %s29 = ssub.s32 128, 128
      %30 = vsyncadd [#allocation6], %s29
      %s32 = sshll.u32 [#allocation5], 4
      %s33 = int_to_ptr.vmem [resolvable:$true] %s32
      %35 = dma.hbm_to_vmem [thread:$0]  %s1, 128, %s33, [#allocation6]
    $region9: #{tpu_custom_call.1} parent=1 // pred_fallthru
      _
    // Predicated region
    $region10: #{tpu_custom_call.1} parent=1 // pred_check
      _
    $region11: #{tpu_custom_call.1} parent=1 // pred_check_branch
      %37 = sbr.rel (0) target = $region13
    $region12: #{tpu_custom_call.1} parent=1 // pred_region
      %s39 = ssub.s32 512, 512
      %40 = vsyncadd [#allocation6], %s39
      %s41 = sshll.u32 [#allocation7], 4
      %s42 = int_to_ptr.vmem [resolvable:$true] %s41
      %47 = dma.hbm_to_vmem [thread:$0]  %s2, 512, %s42, [#allocation6], 128, 128, 8
    $region13: #{tpu_custom_call.1} parent=1 // pred_fallthru
      _
    // Predicated region
    $region14: #{tpu_custom_call.1} parent=1 // pred_check
      _
    $region15: #{tpu_custom_call.1} parent=1 // pred_check_branch
      %49 = sbr.rel (0) target = $region17
    $region16: #{tpu_custom_call.1} parent=1 // pred_region
      _
    $region17: #{tpu_custom_call.1} parent=1 // pred_fallthru
      _
    // Predicated region
    $region18: #{tpu_custom_call.1} parent=1 // pred_check
      _
    $region19: #{tpu_custom_call.1} parent=1 // pred_check_branch
      %51 = sbr.rel (0) target = $region21
    $region20: #{tpu_custom_call.1} parent=1 // pred_region
      %s53 = ssub.s32 128, 128
      %54 = vsyncadd [#allocation9], %s53
      %s56 = sshll.u32 [#allocation8], 4
      %s57 = int_to_ptr.vmem [resolvable:$true] %s56
      %59 = dma.hbm_to_vmem [thread:$0]  %s4, 128, %s57, [#allocation9]
    $region21: #{tpu_custom_call.1} parent=1 // pred_fallthru
      _
    // Predicated region
    $region22: #{tpu_custom_call.1} parent=1 // pred_check
      _
    $region23: #{tpu_custom_call.1} parent=1 // pred_check_branch
      %61 = sbr.rel (0) target = $region25
    $region24: #{tpu_custom_call.1} parent=1 // pred_region
      %62 = dma.done [#allocation3], 1024
    $region25: #{tpu_custom_call.1} parent=1 // pred_fallthru
      _
    // Predicated region
    $region26: #{tpu_custom_call.1} parent=1 // pred_check
      _
    $region27: #{tpu_custom_call.1} parent=1 // pred_check_branch
      %64 = sbr.rel (0) target = $region29
    $region28: #{tpu_custom_call.1} parent=1 // pred_region
      %65 = dma.done [#allocation6], 128
    $region29: #{tpu_custom_call.1} parent=1 // pred_fallthru
      _
    // Predicated region
    $region30: #{tpu_custom_call.1} parent=1 // pred_check
      _
    $region31: #{tpu_custom_call.1} parent=1 // pred_check_branch
      %67 = sbr.rel (0) target = $region33
    $region32: #{tpu_custom_call.1} parent=1 // pred_region
      %68 = dma.done [#allocation6], 512
    $region33: #{tpu_custom_call.1} parent=1 // pred_fallthru
      _
    // Predicated region
    $region34: #{tpu_custom_call.1} parent=1 // pred_check
      _
    $region35: #{tpu_custom_call.1} parent=1 // pred_check_branch
      %70 = sbr.rel (0) target = $region37
    $region36: #{tpu_custom_call.1} parent=1 // pred_region
      %71 = dma.done [#allocation9], 128
    $region37: #{tpu_custom_call.1} parent=1 // pred_fallthru
      _
    %v72 = vld [vmem:[#allocation2] sm:$0xff]
    %v73 = vld [vmem:[#allocation2 + $0x8] sm:$0xff]
    %v74 = vld [vmem:[#allocation2 + $0x10] sm:$0xff]
    %v75 = vld [vmem:[#allocation2 + $0x18] sm:$0xff]
    %v76 = vld [vmem:[#allocation2 + $0x20] sm:$0xff]
    %v77 = vld [vmem:[#allocation2 + $0x28] sm:$0xff]
    %v78 = vld [vmem:[#allocation2 + $0x30] sm:$0xff]
    %v79 = vld [vmem:[#allocation2 + $0x38] sm:$0xff]
    %v80 = vld [vmem:[#allocation7] sm:$0xff]
    %v81 = vld [vmem:[#allocation7 + $0x8] sm:$0xff]
    %v82 = vld [vmem:[#allocation7 + $0x10] sm:$0xff]
    %v83 = vld [vmem:[#allocation7 + $0x18] sm:$0xff]
    %vm84 = vcmask 261120
    %v86 = vsel %vm84, %v72, 0
    %v89 = vsel %vm84, %v73, 0
    %v92 = vsel %vm84, %v74, 0
    %v95 = vsel %vm84, %v75, 0
    %v98 = vsel %vm84, %v76, 0
    %v101 = vsel %vm84, %v77, 0
    %v104 = vsel %vm84, %v78, 0
    %v107 = vsel %vm84, %v79, 0
    %109 = vmatprep.subr.mxu0 0.0
    %110 = vmatpush1.msra.mxu0 0.0
    %111 = vmatprep.subr.mxu0 0.0
    %112 = vmatpush1.msra.mxu0 0.0
    %113 = vmatprep.subr.mxu0 0.0
    %114 = vmatpush1.msra.mxu0 0.0
    %115 = vmatprep.subr.mxu0 0.0
    %116 = vmatpush1.msra.mxu0 0.0
    %117 = vmatprep.subr.mxu0 0.0
    %118 = vmatpush1.msra.mxu0 0.0
    %119 = vmatprep.subr.mxu0 0.0
    %120 = vmatpush1.msra.mxu0 0.0
    %121 = vmatprep.subr.mxu0 0.0
    %122 = vmatpush1.msra.mxu0 0.0
    %123 = vmatprep.subr.mxu0 0.0
    %124 = vmatpush1.msra.mxu0 0.0
    %125 = vmatprep.subr.mxu0 0.0
    %126 = vmatpush1.msra.mxu0 0.0
    %127 = vmatprep.subr.mxu0 0.0
    %128 = vmatpush1.msra.mxu0 0.0
    %129 = vmatprep.subr.mxu0 0.0
    %130 = vmatpush1.msra.mxu0 0.0
    %131 = vmatprep.subr.mxu0 0.0
    %132 = vmatpush1.msra.mxu0 0.0
    %133 = vmatprep.subr.mxu0 0.0
    %134 = vmatpush1.msra.mxu0 %v83
    %135 = vmatprep.subr.mxu0 0.0
    %136 = vmatpush1.msra.mxu0 %v82
    %137 = vmatprep.subr.mxu0 0.0
    %138 = vmatpush1.msra.mxu0 %v81
    %139 = vmatprep.subr.mxu0 0.0
    %140 = vmatpush1.msra.mxu0 %v80
    %141 = vmatprep.subr.mxu0 0.0
    %142 = vmatpush2.msra.mxu0 0.0
    %143 = vmatprep.subr.mxu0 0.0
    %144 = vmatpush2.msra.mxu0 0.0
    %145 = vmatprep.subr.mxu0 0.0
    %146 = vmatpush2.msra.mxu0 0.0
    %147 = vmatprep.subr.mxu0 0.0
    %148 = vmatpush2.msra.mxu0 0.0
    %149 = vmatprep.subr.mxu0 0.0
    %150 = vmatpush2.msra.mxu0 0.0
    %151 = vmatprep.subr.mxu0 0.0
    %152 = vmatpush2.msra.mxu0 0.0
    %153 = vmatprep.subr.mxu0 0.0
    %154 = vmatpush2.msra.mxu0 0.0
    %155 = vmatprep.subr.mxu0 0.0
    %156 = vmatpush2.msra.mxu0 0.0
    %157 = vmatprep.subr.mxu0 0.0
    %158 = vmatpush2.msra.mxu0 0.0
    %159 = vmatprep.subr.mxu0 0.0
    %160 = vmatpush2.msra.mxu0 0.0
    %161 = vmatprep.subr.mxu0 0.0
    %162 = vmatpush2.msra.mxu0 0.0
    %163 = vmatprep.subr.mxu0 0.0
    %164 = vmatpush2.msra.mxu0 0.0
    %165 = vmatprep.subr.mxu0 0.0
    %166 = vmatpush2.msra.mxu0 0.0
    %167 = vmatprep.subr.mxu0 0.0
    %168 = vmatpush2.msra.mxu0 0.0
    %169 = vmatprep.subr.mxu0 0.0
    %170 = vmatpush2.msra.mxu0 0.0
    %171 = vmatprep.subr.mxu0 0.0
    %172 = vmatpush2.msra.mxu0 0.0
    %173 = vmatprep.mubr.f32.mxu0 0.0
    %174 = vmatmul.mubr.f32.gmra.mxu0 %v86
    %v175 = vpop.f32.mrf.mxu0
    %v176 = vadd.f32 0.0, %v175
    %v177 = vpop.f32.mrf.mxu0
    %178 = vmatprep.mubr.f32.mxu0 0.0
    %179 = vmatmul.mubr.f32.gmra.mxu0 %v89
    %v180 = vpop.f32.mrf.mxu0
    %v181 = vadd.f32 0.0, %v180
    %v182 = vpop.f32.mrf.mxu0
    %183 = vmatprep.mubr.f32.mxu0 0.0
    %184 = vmatmul.mubr.f32.gmra.mxu0 %v92
    %v185 = vpop.f32.mrf.mxu0
    %v186 = vadd.f32 0.0, %v185
    %v187 = vpop.f32.mrf.mxu0
    %188 = vmatprep.mubr.f32.mxu0 0.0
    %189 = vmatmul.mubr.f32.gmra.mxu0 %v95
    %v190 = vpop.f32.mrf.mxu0
    %v191 = vadd.f32 0.0, %v190
    %v192 = vpop.f32.mrf.mxu0
    %193 = vmatprep.mubr.f32.mxu0 0.0
    %194 = vmatmul.mubr.f32.gmra.mxu0 %v98
    %v195 = vpop.f32.mrf.mxu0
    %v196 = vadd.f32 0.0, %v195
    %v197 = vpop.f32.mrf.mxu0
    %198 = vmatprep.mubr.f32.mxu0 0.0
    %199 = vmatmul.mubr.f32.gmra.mxu0 %v101
    %v200 = vpop.f32.mrf.mxu0
    %v201 = vadd.f32 0.0, %v200
    %v202 = vpop.f32.mrf.mxu0
    %203 = vmatprep.mubr.f32.mxu0 0.0
    %204 = vmatmul.mubr.f32.gmra.mxu0 %v104
    %v205 = vpop.f32.mrf.mxu0
    %v206 = vadd.f32 0.0, %v205
    %v207 = vpop.f32.mrf.mxu0
    %208 = vmatprep.mubr.f32.mxu0 0.0
    %209 = vmatmul.mubr.f32.gmra.mxu0 %v107
    %v210 = vpop.f32.mrf.mxu0
    %v211 = vadd.f32 0.0, %v210
    %v212 = vpop.f32.mrf.mxu0
    %213 = vdwg.mxu0
    %v214 = vld [vmem:[#allocation5] sm:$0xff]
    %v216 = vcombine.high %v214, %v214
    %v218 = vunpack.c.l.s4 1966171168
    %v219 = vunpack.c.0.s8 %v218
    %v220 = vlaneseq
    %v221 = vshrl.u32 %v220, 7
    %v222 = vsub.s32 %v219, %v221
    %v223 = vrot.slane %v214, %v222
    %v225 = vunpack.c.l.s4 1966171168
    %v226 = vunpack.c.0.s8 %v225
    %v227 = vlaneseq
    %v228 = vshrl.u32 %v227, 7
    %v229 = vsub.s32 %v226, %v228
    %v230 = vrot.slane %v216, %v229
    %v231 = vcombine.high %v223, %v223
    %v232 = vcombine.high %v230, %v230
    %v234 = vunpack.c.l.s4 1966171168
    %v235 = vunpack.c.0.s8 %v234
    %v236 = vlaneseq
    %v237 = vshrl.u32 %v236, 7
    %v238 = vsub.s32 %v235, %v237
    %v239 = vrot.slane %v223, %v238
    %v241 = vunpack.c.l.s4 1966171168
    %v242 = vunpack.c.0.s8 %v241
    %v243 = vlaneseq
    %v244 = vshrl.u32 %v243, 7
    %v245 = vsub.s32 %v242, %v244
    %v246 = vrot.slane %v230, %v245
    %v248 = vunpack.c.l.s4 1966171168
    %v249 = vunpack.c.0.s8 %v248
    %v250 = vlaneseq
    %v251 = vshrl.u32 %v250, 7
    %v252 = vsub.s32 %v249, %v251
    %v253 = vrot.slane %v231, %v252
    %v255 = vunpack.c.l.s4 1966171168
    %v256 = vunpack.c.0.s8 %v255
    %v257 = vlaneseq
    %v258 = vshrl.u32 %v257, 7
    %v259 = vsub.s32 %v256, %v258
    %v260 = vrot.slane %v232, %v259
    %v261 = vcombine.high %v239, %v239
    %v262 = vcombine.high %v246, %v246
    %v263 = vcombine.high %v253, %v253
    %v264 = vcombine.high %v260, %v260
    %v265 = vlaneseq
    %v266 = vshrl.u32 %v265, 7
    %v267 = vsub.s32 0, %v266
    %v268 = vrot.slane %v239, %v267
    %v269 = vlaneseq
    %v270 = vshrl.u32 %v269, 7
    %v271 = vsub.s32 0, %v270
    %v272 = vrot.slane %v253, %v271
    %v273 = vlaneseq
    %v274 = vshrl.u32 %v273, 7
    %v275 = vsub.s32 0, %v274
    %v276 = vrot.slane %v261, %v275
    %v277 = vlaneseq
    %v278 = vshrl.u32 %v277, 7
    %v279 = vsub.s32 0, %v278
    %v280 = vrot.slane %v263, %v279
    %v281 = vlaneseq
    %v282 = vshrl.u32 %v281, 7
    %v283 = vsub.s32 0, %v282
    %v284 = vrot.slane %v246, %v283
    %v285 = vlaneseq
    %v286 = vshrl.u32 %v285, 7
    %v287 = vsub.s32 0, %v286
    %v288 = vrot.slane %v260, %v287
    %v289 = vlaneseq
    %v290 = vshrl.u32 %v289, 7
    %v291 = vsub.s32 0, %v290
    %v292 = vrot.slane %v262, %v291
    %v293 = vlaneseq
    %v294 = vshrl.u32 %v293, 7
    %v295 = vsub.s32 0, %v294
    %v296 = vrot.slane %v264, %v295
    %v305 = vadd.f32 %v176, %v268
    %v306 = vadd.f32 %v181, %v272
    %v307 = vadd.f32 %v186, %v276
    %v308 = vadd.f32 %v191, %v280
    %v309 = vadd.f32 %v196, %v284
    %v310 = vadd.f32 %v201, %v288
    %v311 = vadd.f32 %v206, %v292
    %v312 = vadd.f32 %v211, %v296
    %v313 = vtanh.pop %v305
    %v314 = vtanh.pop %v306
    %v315 = vtanh.pop %v307
    %v316 = vtanh.pop %v308
    %v317 = vtanh.pop %v309
    %v318 = vtanh.pop %v310
    %v319 = vtanh.pop %v311
    %v320 = vtanh.pop %v312
    %v321 = vld [vmem:[%s3] sm:$0x1]
    %v323 = vlaneseq
    %v324 = vshrl.u32 %v323, 7
    %v325 = vsub.s32 0, %v324
    %v326 = vrot.slane %v321, %v325
    %v328 = vmul.f32 %v313, %v326
    %v329 = vmul.f32 %v314, %v326
    %v330 = vmul.f32 %v315, %v326
    %v331 = vmul.f32 %v316, %v326
    %v332 = vmul.f32 %v317, %v326
    %v333 = vmul.f32 %v318, %v326
    %v334 = vmul.f32 %v319, %v326
    %v335 = vmul.f32 %v320, %v326
    %v336 = vsel %vm84, %v328, 0.0
    %337 = vadd.xlane.f32.xlu0 %v336
    %v338 = vpop.xlane.xlu0 %337
    %v339 = vsel %vm84, %v329, 0.0
    %340 = vadd.xlane.f32.xlu0 %v339
    %v341 = vpop.xlane.xlu0 %340
    %v342 = vsel %vm84, %v330, 0.0
    %343 = vadd.xlane.f32.xlu0 %v342
    %v344 = vpop.xlane.xlu0 %343
    %v345 = vsel %vm84, %v331, 0.0
    %346 = vadd.xlane.f32.xlu0 %v345
    %v347 = vpop.xlane.xlu0 %346
    %v348 = vsel %vm84, %v332, 0.0
    %349 = vadd.xlane.f32.xlu0 %v348
    %v350 = vpop.xlane.xlu0 %349
    %v351 = vsel %vm84, %v333, 0.0
    %352 = vadd.xlane.f32.xlu0 %v351
    %v353 = vpop.xlane.xlu0 %352
    %v354 = vsel %vm84, %v334, 0.0
    %355 = vadd.xlane.f32.xlu0 %v354
    %v356 = vpop.xlane.xlu0 %355
    %v357 = vsel %vm84, %v335, 0.0
    %358 = vadd.xlane.f32.xlu0 %v357
    %v359 = vpop.xlane.xlu0 %358
    %v360 = vld [vmem:[#allocation8] sm:$0xff]
    %vm361 = vcmp.eq.f32.partialorder %v360, 0.0
    %v370 = vlaneseq
    %v371 = vand.u32 %v370, 127
    %v372 = vlaneseq
    %v373 = vshrl.u32 %v372, 7
    %v374 = vsub.s32 %v371, %v373
    %v375 = vrot.slane %v338, %v374
    %v376 = vlaneseq
    %v377 = vshrl.u32 %v376, 7
    %v378 = vsub.s32 %v371, %v377
    %v379 = vrot.slane %v341, %v378
    %v380 = vlaneseq
    %v381 = vshrl.u32 %v380, 7
    %v382 = vsub.s32 %v371, %v381
    %v383 = vrot.slane %v344, %v382
    %v384 = vlaneseq
    %v385 = vshrl.u32 %v384, 7
    %v386 = vsub.s32 %v371, %v385
    %v387 = vrot.slane %v347, %v386
    %v388 = vlaneseq
    %v389 = vshrl.u32 %v388, 7
    %v390 = vsub.s32 %v371, %v389
    %v391 = vrot.slane %v350, %v390
    %v392 = vlaneseq
    %v393 = vshrl.u32 %v392, 7
    %v394 = vsub.s32 %v371, %v393
    %v395 = vrot.slane %v353, %v394
    %v396 = vlaneseq
    %v397 = vshrl.u32 %v396, 7
    %v398 = vsub.s32 %v371, %v397
    %v399 = vrot.slane %v356, %v398
    %v400 = vlaneseq
    %v401 = vshrl.u32 %v400, 7
    %v402 = vsub.s32 %v371, %v401
    %v403 = vrot.slane %v359, %v402
    %vm404 = vcmask 1041409
    %v405 = vsel %vm404, %v379, %v375
    %vm406 = vcmask 1042434
    %v407 = vsel %vm406, %v383, %v405
    %vm408 = vcmask 1043459
    %v409 = vsel %vm408, %v387, %v407
    %vm410 = vcmask 1044484
    %v411 = vsel %vm410, %v391, %v409
    %vm412 = vcmask 1045509
    %v413 = vsel %vm412, %v395, %v411
    %vm414 = vcmask 1046534
    %v415 = vsel %vm414, %v399, %v413
    %vm416 = vcmask 1047559
    %v417 = vsel %vm416, %v403, %v415
    %v419 = vsel %vm361, -1e+10, %v417
    %vm420 = vcmask 64512
    %v421 = vsel %vm420, %v419, -inf
    %422 = vmax.xlane.f32.xlu0 %v421
    %v423 = vpop.xlane.xlu0 %422
    %v424 = vsub.f32 %v419, %v423
    %v425 = vmul.f32 %v424, 1.442695
    %v426 = vpow.pop %v425
    %v427 = vsel %vm420, %v426, 0.0
    %428 = vadd.xlane.f32.xlu0 %v427
    %v429 = vpop.xlane.xlu0 %428
    %v430 = vrcp.pop %v429
    %v431 = vmul.f32 %v429, %v430
    %v432 = vsub.f32 2.0, %v431
    %v433 = vmul.f32 %v430, %v432
    %v434 = vmul.f32 %v426, %v433
    %435 = vst.msk [vmem:[#allocation10] sm:$0xff] %vm420, %v434
    // Predicated region
    $region38: #{tpu_custom_call.1} parent=1 // pred_check
      _
    $region39: #{tpu_custom_call.1} parent=1 // pred_check_branch
      %437 = sbr.rel (0) target = $region41
    $region40: #{tpu_custom_call.1} parent=1 // pred_region
      %s439 = ssub.s32 128, 128
      %440 = vsyncadd [#allocation4], %s439
      %s442 = sshll.u32 [#allocation10], 4
      %s443 = int_to_ptr.vmem [resolvable:$true] %s442
      %445 = dma.vmem_to_hbm [thread:$0]  %s443, 128, %s5, [#allocation4]
    $region41: #{tpu_custom_call.1} parent=1 // pred_fallthru
      _
    // Predicated region
    $region42: #{tpu_custom_call.1} parent=1 // pred_check
      _
    $region43: #{tpu_custom_call.1} parent=1 // pred_check_branch
      %447 = sbr.rel (0) target = $region45
    $region44: #{tpu_custom_call.1} parent=1 // pred_region
      %448 = dma.done [#allocation4], 128
    $region45: #{tpu_custom_call.1} parent=1 // pred_fallthru
      _
    %449 = vsyncpa [#allocation3], 1
    %450 = vsyncpa [#allocation6], 1
    %451 = vsyncpa [#allocation9], 1
    %452 = vsyncpa [#allocation4], 1

</llo_original>
